<compile_context>
chip_gen: v6e
topology: v6e:2x2x1
jax: 0.10.0
libtpu: 0.0.40
codegen_flags: <defaults>
</compile_context>

<pallas_src>
import jax
import jax.numpy as jnp
from jax.experimental import pallas as pl
from jax.experimental.pallas import tpu as pltpu


def _round_up(x: int, m: int) -> int:
    return ((x + m - 1) // m) * m


def _proj_kernel(pos_ref, w_ref, b_ref, o_ref):
    # pos_ref: (S_t, D_in)   one S-tile of the shared position embedding
    # w_ref  : (D_in, D_out) canonical (K, N) weight (transposed once in wrapper)
    # b_ref  : (1, D_out)
    # o_ref  : (S_t, D_out)
    y = jnp.dot(pos_ref[...], w_ref[...], preferred_element_type=jnp.float32)
    o_ref[...] = (y + b_ref[...].astype(jnp.float32)).astype(o_ref.dtype)


def _proj_bcast_kernel(pos_ref, w_ref, b_ref, o_ref, acc_ref):
    # grid = (n_s_tiles, B); batch axis is innermost and only drives the output
    # index_map.  The projection for this S tile is computed exactly once
    # (b == 0) into a persistent VMEM scratch and re-stored for every batch
    # index, so the batch broadcast rides the output DMA for free.
    @pl.when(pl.program_id(1) == 0)
    def _():
        y = jnp.dot(pos_ref[...], w_ref[...], preferred_element_type=jnp.float32)
        acc_ref[...] = (y + b_ref[...].astype(jnp.float32)).astype(acc_ref.dtype)

    o_ref[...] = acc_ref[...]


def position_encoding_projector(pos_emb, weight, bias, batch_size, *,
                                s_block=2048, out_dtype=None,
                                materialize_batch=True):
    """Project a (S, D_in) base position encoding to (B, S, D_out).

    pos_emb : (S, D_in)      trainable base position encoding
    weight  : (D_out, D_in)  torch.nn.Linear weight layout
    bias    : (D_out,)
    """
    S, D_in = pos_emb.shape
    D_out = weight.shape[0]
    out_dtype = pos_emb.dtype if out_dtype is None else jnp.dtype(out_dtype)
    out_isz = jnp.dtype(out_dtype).itemsize

    def _vmem_need(st):
        # double-buffered pos + out tiles, acc scratch, weight + bias copies
        return (2 * st * D_in * pos_emb.dtype.itemsize
                + 2 * st * D_out * out_isz
                + st * D_out * out_isz
                + 2 * D_in * D_out * weight.dtype.itemsize
                + 2 * 8 * _round_up(D_out, 128) * 4)

    # ---- S tile selection ----
    s_block = max(8, _round_up(int(s_block), 8))
    if S <= 16:
        s_t = S  # single full-extent block; no (8,128) divisibility constraint
    else:
        # at least 2 tiles so v7x's two TensorCores both get work on the
        # "parallel" S axis; otherwise as large as the VMEM budget allows.
        s_t = min(s_block, _round_up(pl.cdiv(S, 2), 8))
        budget = 24 * 1024 * 1024  # conservative: fits every generation
        while s_t > 8 and _vmem_need(s_t) > budget:
            s_t = max(8, _round_up(s_t // 2, 8))

    n_s = pl.cdiv(S, s_t)
    vmem_limit = int(min(48 * 1024 * 1024,
                         max(32 * 1024 * 1024, 2 * _vmem_need(s_t))))

    w_t = weight.T            # (D_in, D_out): one-time tiny transpose (often
                              # constant-folded for parameters); lane-dense RHS
    b2 = bias.reshape(1, D_out)

    if materialize_batch:
        return pl.pallas_call(
            _proj_bcast_kernel,
            out_shape=jax.ShapeDtypeStruct((batch_size, S, D_out), out_dtype),
            grid_spec=pltpu.PrefetchScalarGridSpec(
                num_scalar_prefetch=0,
                grid=(n_s, batch_size),                      # batch innermost
                in_specs=[
                    pl.BlockSpec((s_t, D_in), lambda s, b: (s, 0)),
                    pl.BlockSpec((D_in, D_out), lambda s, b: (0, 0)),
                    pl.BlockSpec((1, D_out), lambda s, b: (0, 0)),
                ],
                out_specs=pl.BlockSpec((None, s_t, D_out),
                                       lambda s, b: (b, s, 0)),
                scratch_shapes=[pltpu.VMEM((s_t, D_out), out_dtype)],
            ),
            compiler_params=pltpu.CompilerParams(
                dimension_semantics=("parallel", "arbitrary"),
                vmem_limit_bytes=vmem_limit,
            ),
        )(pos_emb, w_t, b2)

    proj = pl.pallas_call(
        _proj_kernel,
        out_shape=jax.ShapeDtypeStruct((S, D_out), out_dtype),
        grid_spec=pltpu.PrefetchScalarGridSpec(
            num_scalar_prefetch=0,
            grid=(n_s,),
            in_specs=[
                pl.BlockSpec((s_t, D_in), lambda s: (s, 0)),
                pl.BlockSpec((D_in, D_out), lambda s: (0, 0)),
                pl.BlockSpec((1, D_out), lambda s: (0, 0)),
            ],
            out_specs=pl.BlockSpec((s_t, D_out), lambda s: (s, 0)),
        ),
        compiler_params=pltpu.CompilerParams(
            dimension_semantics=("parallel",),
            vmem_limit_bytes=vmem_limit,
        ),
    )(pos_emb, w_t, b2)
    # Lazy broadcast: consumer/XLA materializes only if needed.
    return jnp.broadcast_to(proj[None], (batch_size, S, D_out))


def reference(pos_emb, weight, bias, batch_size):
    base = jnp.broadcast_to(pos_emb[None], (batch_size,) + pos_emb.shape)
    return jnp.einsum("bsd,od->bso", base, weight) + bias


if __name__ == "__main__":
    key = jax.random.PRNGKey(0)
    k_pos, k_w, k_b = jax.random.split(key, 3)

    # --- small shapes consistent with the module's forward ---
    batch_size = 2
    seq = 8          # index dimension of the base position encoding
    d_in = 32        # base position-encoding channels
    output_size = 64 # projector output size

    pos_emb = jax.random.normal(k_pos, (seq, d_in), dtype=jnp.float32) * 0.02
    bound = 1.0 / (d_in ** 0.5)
    weight = jax.random.uniform(k_w, (output_size, d_in), jnp.float32, -bound, bound)
    bias = jax.random.uniform(k_b, (output_size,), jnp.float32, -bound, bound)

    ref = reference(pos_emb, weight, bias, batch_size)

    out = jax.block_until_ready(
        position_encoding_projector(pos_emb, weight, bias, batch_size))
    assert out.shape == (batch_size, seq, output_size)
    assert jnp.allclose(out, ref, atol=1e-5, rtol=1e-5)

    out_lazy = jax.block_until_ready(
        position_encoding_projector(pos_emb, weight, bias, batch_size,
                                    materialize_batch=False))
    assert out_lazy.shape == (batch_size, seq, output_size)
    assert jnp.allclose(out_lazy, ref, atol=1e-5, rtol=1e-5)

    # --- larger, lane-dense shape exercising the tiled-S + fused-batch path ---
    seq2, d_in2, d_out2 = 2048, 32, 128
    pos_emb2 = jax.random.normal(k_pos, (seq2, d_in2), dtype=jnp.float32) * 0.02
    bound2 = 1.0 / (d_in2 ** 0.5)
    weight2 = jax.random.uniform(k_w, (d_out2, d_in2), jnp.float32, -bound2, bound2)
    bias2 = jax.random.uniform(k_b, (d_out2,), jnp.float32, -bound2, bound2)

    out2 = jax.block_until_ready(
        position_encoding_projector(pos_emb2, weight2, bias2, batch_size))
    ref2 = reference(pos_emb2, weight2, bias2, batch_size)
    assert out2.shape == (batch_size, seq2, d_out2)
    assert jnp.allclose(out2, ref2, atol=1e-5, rtol=1e-5)

    print("KERNEL_OK")
</pallas_src>

<mosaic_0001>
module attributes {stable_mosaic.version = 11 : i64} {
  func.func @_proj_bcast_kernel(%arg0: i32, %arg1: i32, %arg2: memref<8x32xf32, #tpu.memory_space<vmem>>, %arg3: memref<32x64xf32, #tpu.memory_space<vmem>>, %arg4: memref<1x64xf32, #tpu.memory_space<vmem>>, %arg5: memref<1x8x64xf32, #tpu.memory_space<vmem>>, %arg6: memref<8x64xf32, #tpu.memory_space<vmem>>) attributes {dimension_semantics = [#tpu.dimension_semantics<parallel>, #tpu.dimension_semantics<arbitrary>], iteration_bounds = array<i64: 1, 2>, scalar_prefetch = 0 : i64, scratch_operands = 1 : i64, tpu.core_type = #tpu.core_type<tc>, window_params = [{transform_indices = @transform_0, window_bounds = array<i64: 8, 32>}, {pipeline_mode = #tpu.pipeline_mode<synchronous>, transform_indices = @transform_1, window_bounds = array<i64: 32, 64>}, {pipeline_mode = #tpu.pipeline_mode<synchronous>, transform_indices = @transform_2, window_bounds = array<i64: 1, 64>}, {transform_indices = @transform_3, window_bounds = array<i64: 1, 8, 64>}]} {
    %c0_i32 = arith.constant 0 : i32
    %0 = arith.cmpi eq, %arg1, %c0_i32 : i32
    %1 = arith.extui %0 : i1 to i32
    %c0_i32_0 = arith.constant 0 : i32
    %2 = arith.cmpi ne, %1, %c0_i32_0 : i32
    scf.if %2 {
      %c0_5 = arith.constant 0 : index
      %c0_6 = arith.constant 0 : index
      %7 = vector.load %arg2[%c0_5, %c0_6] : memref<8x32xf32, #tpu.memory_space<vmem>>, vector<8x32xf32>
      %c0_7 = arith.constant 0 : index
      %c0_8 = arith.constant 0 : index
      %8 = vector.load %arg3[%c0_7, %c0_8] : memref<32x64xf32, #tpu.memory_space<vmem>>, vector<32x64xf32>
      %cst = arith.constant dense<0.000000e+00> : vector<8x64xf32>
      %9 = tpu.matmul %7, %8, %cst {dimension_numbers = #tpu.dot_dimension_numbers<[1], [0], [0], [1], [0, 0, 1, 1], [], []>} : vector<8x32xf32>, vector<32x64xf32>, vector<8x64xf32> -> vector<8x64xf32>
      %c0_9 = arith.constant 0 : index
      %c0_10 = arith.constant 0 : index
      %10 = vector.load %arg4[%c0_9, %c0_10] : memref<1x64xf32, #tpu.memory_space<vmem>>, vector<1x64xf32>
      %11 = vector.broadcast %10 : vector<1x64xf32> to vector<8x64xf32>
      %12 = arith.addf %9, %11 : vector<8x64xf32>
      %c0_11 = arith.constant 0 : index
      %c0_12 = arith.constant 0 : index
      %13 = vector.load %arg6[%c0_11, %c0_12] : memref<8x64xf32, #tpu.memory_space<vmem>>, vector<8x64xf32>
      tpu.vector_store %arg6[%c0_11, %c0_12], %12 {strides = array<i32>} : memref<8x64xf32, #tpu.memory_space<vmem>>, vector<8x64xf32>,
    } else {
    }
    %c0 = arith.constant 0 : index
    %c0_1 = arith.constant 0 : index
    %3 = vector.load %arg6[%c0, %c0_1] : memref<8x64xf32, #tpu.memory_space<vmem>>, vector<8x64xf32>
    %c0_2 = arith.constant 0 : index
    %c0_3 = arith.constant 0 : index
    %c0_4 = arith.constant 0 : index
    %4 = vector.load %arg5[%c0_2, %c0_3, %c0_4] : memref<1x8x64xf32, #tpu.memory_space<vmem>>, vector<1x8x64xf32>
    %5 = vector.shape_cast %4 : vector<1x8x64xf32> to vector<8x64xf32>
    %6 = vector.shape_cast %3 : vector<8x64xf32> to vector<1x8x64xf32>
    tpu.vector_store %arg5[%c0_2, %c0_3, %c0_4], %6 {strides = array<i32>} : memref<1x8x64xf32, #tpu.memory_space<vmem>>, vector<1x8x64xf32>,
    return
  }
  func.func @transform_0(%arg0: i32, %arg1: i32) -> (i32, i32) {
    %c0_i32 = arith.constant 0 : i32
    %c0_i32_0 = arith.constant 0 : i32
    return %arg0, %c0_i32 : i32, i32
  }
  func.func @transform_1(%arg0: i32, %arg1: i32) -> (i32, i32) {
    %c0_i32 = arith.constant 0 : i32
    %c0_i32_0 = arith.constant 0 : i32
    %c0_i32_1 = arith.constant 0 : i32
    return %c0_i32, %c0_i32_0 : i32, i32
  }
  func.func @transform_2(%arg0: i32, %arg1: i32) -> (i32, i32) {
    %c0_i32 = arith.constant 0 : i32
    %c0_i32_0 = arith.constant 0 : i32
    %c0_i32_1 = arith.constant 0 : i32
    return %c0_i32, %c0_i32_0 : i32, i32
  }
  func.func @transform_3(%arg0: i32, %arg1: i32) -> (i32, i32, i32) {
    %c0_i32 = arith.constant 0 : i32
    %c0_i32_0 = arith.constant 0 : i32
    return %arg1, %arg0, %c0_i32 : i32, i32, i32
  }
}

</mosaic_0001>

<llo_original>
// kernel: tpu_custom_call.1
$region0: #{tpu_custom_call.1}
  #allocation0 [shape = 'u32[]', space=smem, size = 0x4, offset = 0x4, fixed_abs, tag = 'smem constant byte address 0x4 - core index']
  #allocation1 [shape = 'u32[144,128]{1,0:T(1,128)}', space=vmem, size = 0x12000, scoped, tag = 'internal scratch']
  #allocation2 [shape = 'f32[8,64]{1,0:T(8,128)}', space=vmem, size = 0x1000, scoped, tag = 'scratch operand']
  %s0 = inlined_call_operand.hbm [shape: f32[8,32], index: 0, kind: input, shape index: {}]
  %s1 = inlined_call_operand.hbm [shape: f32[32,64], index: 1, kind: input, shape index: {}]
  %s2 = inlined_call_operand.vmem [shape: f32[1,64], index: 2, kind: input, shape index: {}]
  %s3 = inlined_call_operand.hbm [shape: f32[2,8,64], index: 3, kind: output, shape index: {}]
  %s4 = sld [smem:[#allocation0]]
  $region57: #{tpu_custom_call.1} parent=0
    _
  %s6 = ssub.s32 1, %s4
  %s7 = scalar_select 0, %s6, %s4
  $region1: #{tpu_custom_call.1} parent=0
    #allocation3 [shape = 'u8[4096]{0}', space=vmem, size = 0x1000, scoped, tag = 'input window, operand 0, single buffered']
    #allocation4 [shape = 's32[2]{0}', space=sflag, size = 0x8, scoped, tag = 'scoped memory for tpu_custom_call.1']
    #allocation5 [shape = 's32[2]{0}', space=sflag, size = 0x8, scoped, tag = 'scoped memory for tpu_custom_call.1']
    #allocation6 [shape = 'u8[16384]{0}', space=vmem, size = 0x4000, scoped, tag = 'input window, operand 1, single buffered']
    #allocation7 [shape = 's32[1]{0}', space=sflag, size = 0x4, scoped, tag = 'scoped memory for tpu_custom_call.1']
    #allocation8 [shape = 'u8[8192]{0}', space=vmem, size = 0x2000, scoped, tag = 'output window, operand 0']
    %8 = vsyncpa [#allocation4], 0
    %9 = vsyncpa [#allocation7], 0
    %10 = vsyncpa [#allocation5], 0
    %s11 = scalar_lea.sflag [#allocation5], 1
    %12 = vsyncpa %s11, 0
    loop: start=0, step=1, limit=4
    $region2: #{tpu_custom_call.1} parent=1 // loop_pre_header
      _
    $region3: #{tpu_custom_call.1} parent=1 // loop_header
      %s14 = sphi 0, %s18
      %p15 = scmp.ge.s32.totalorder %s14, 4
      %s21 = sphi 0, %s33
      %s22 = sphi 0, %s29
      %s23 = sphi 0, %s21
      %s24 = sphi 0, %s22
      %s25 = sphi 0, %s23
      %s26 = sphi 0, %s24
      %s36 = sphi 0, %s38
      %s39 = sphi 0, %s36
      %s40 = sphi 0, %s39
      %s56 = sphi 0, %s40
      %s60 = sphi 0, %s60
      %s62 = sphi 0, %s60
      %s63 = sphi 0, %s62
      %s77 = sphi 0, %s63
      %s81 = sphi 0, %s81
      %s83 = sphi 0, %s81
      %s84 = sphi 0, %s83
      %s98 = sphi 0, %s84
      %s106 = sphi 0, %s108
      %s109 = sphi 0, %s106
      %s110 = sphi 0, %s109
      %s126 = sphi 0, %s110
    $region4: #{tpu_custom_call.1} parent=1 // loop_header_branch
      %17 = sbr.rel (%p15) target = $region8
    $region5: #{tpu_custom_call.1} parent=1 // loop_body
      %s19 = ssub.s32 %s14, 1
      %s20 = ssub.s32 %s14, 2
      %s27 = sadd.s32 1, %s22
      %p28 = scmp.ge.s32.totalorder %s27, 2
      %s29 = scalar_select %p28, 0, %s27
      %s30 = sadd.s32 1, %s21
      %s31 = scalar_select %p28, %s30, %s21
      %p32 = scmp.ge.s32.totalorder %s31, 1
      %s33 = scalar_select %p32, 0, %s31
      %s34 = ssub.s32 %s21, %s33
      %p35 = scmp.eq.s32.totalorder %s34, 0
      %s37 = sadd.s32 %s36, 1
      %s38 = scalar_select %p35, %s36, %s37
      %p41 = pneg %p35
      %p42 = scmp.eq.s32.totalorder %s14, 1
      %p43 = por %p41, %p42
      %p44 = scmp.ne.s32.totalorder %s36, %s39
      %p45 = scmp.eq.s32.totalorder %s14, 0
      %p46 = por %p44, %p45
      %p47 = scmp.ne.s32.totalorder %s36, %s39
      %p48 = scmp.eq.s32.totalorder %s19, 1
      %p49 = por %p47, %p48
      %p50 = scmp.ne.s32.totalorder %s39, %s40
      %p51 = scmp.eq.s32.totalorder %s19, 0
      %p52 = por %p50, %p51
      %p53 = scmp.ne.s32.totalorder %s39, %s40
      %p54 = scmp.eq.s32.totalorder %s20, 1
      %p55 = por %p53, %p54
      %p57 = scmp.ne.s32.totalorder %s40, %s56
      %p58 = scmp.eq.s32.totalorder %s20, 0
      %p59 = por %p57, %p58
      %s61 = sadd.s32 %s60, 1
      %p64 = scmp.eq.s32.totalorder %s14, 1
      %p65 = scmp.ne.s32.totalorder %s60, %s62
      %p66 = scmp.eq.s32.totalorder %s14, 0
      %p67 = por %p65, %p66
      %p68 = scmp.ne.s32.totalorder %s60, %s62
      %p69 = scmp.eq.s32.totalorder %s19, 1
      %p70 = por %p68, %p69
      %p71 = scmp.ne.s32.totalorder %s62, %s63
      %p72 = scmp.eq.s32.totalorder %s19, 0
      %p73 = por %p71, %p72
      %p74 = scmp.ne.s32.totalorder %s62, %s63
      %p75 = scmp.eq.s32.totalorder %s20, 1
      %p76 = por %p74, %p75
      %p78 = scmp.ne.s32.totalorder %s63, %s77
      %p79 = scmp.eq.s32.totalorder %s20, 0
      %p80 = por %p78, %p79
      %s82 = sadd.s32 %s81, 1
      %p85 = scmp.eq.s32.totalorder %s14, 1
      %p86 = scmp.ne.s32.totalorder %s81, %s83
      %p87 = scmp.eq.s32.totalorder %s14, 0
      %p88 = por %p86, %p87
      %p89 = scmp.ne.s32.totalorder %s81, %s83
      %p90 = scmp.eq.s32.totalorder %s19, 1
      %p91 = por %p89, %p90
      %p92 = scmp.ne.s32.totalorder %s83, %s84
      %p93 = scmp.eq.s32.totalorder %s19, 0
      %p94 = por %p92, %p93
      %p95 = scmp.ne.s32.totalorder %s83, %s84
      %p96 = scmp.eq.s32.totalorder %s20, 1
      %p97 = por %p95, %p96
      %p99 = scmp.ne.s32.totalorder %s84, %s98
      %p100 = scmp.eq.s32.totalorder %s20, 0
      %p101 = por %p99, %p100
      %s102 = ssub.s32 %s22, %s29
      %s103 = ssub.s32 %s21, %s33
      %s104 = sor.u32 %s102, %s103
      %p105 = scmp.eq.s32.totalorder %s104, 0
      %s107 = sadd.s32 %s106, 1
      %s108 = scalar_select %p105, %s106, %s107
      %p111 = pneg %p105
      %p112 = scmp.eq.s32.totalorder %s14, 1
      %p113 = por %p111, %p112
      %p114 = scmp.ne.s32.totalorder %s106, %s109
      %p115 = scmp.eq.s32.totalorder %s14, 0
      %p116 = por %p114, %p115
      %p117 = scmp.ne.s32.totalorder %s106, %s109
      %p118 = scmp.eq.s32.totalorder %s19, 1
      %p119 = por %p117, %p118
      %p120 = scmp.ne.s32.totalorder %s109, %s110
      %p121 = scmp.eq.s32.totalorder %s19, 0
      %p122 = por %p120, %p121
      %p123 = scmp.ne.s32.totalorder %s109, %s110
      %p124 = scmp.eq.s32.totalorder %s20, 1
      %p125 = por %p123, %p124
      %p127 = scmp.ne.s32.totalorder %s110, %s126
      %p128 = scmp.eq.s32.totalorder %s20, 0
      %p129 = por %p127, %p128
      %p130 = scmp.le.s32.totalorder 1, %s14
      %p131 = scmp.lt.s32.totalorder %s14, 3
      %p132 = pnand %p130, %p131
      %p133 = pneg %p132
      // Predicated region
      $region9: #{tpu_custom_call.1} parent=5 // pred_check
        _
      $region10: #{tpu_custom_call.1} parent=5 // pred_check_branch
        %135 = sbr.rel (%p132) target = $region12
      $region11: #{tpu_custom_call.1} parent=5 // pred_region
        %s136 = ssub.s32 %s14, 1
        // Predicated region
        $region13: #{tpu_custom_call.1} parent=11 // pred_check
          %p137 = pneg %p52
        $region14: #{tpu_custom_call.1} parent=11 // pred_check_branch
          %139 = sbr.rel (%p137) target = $region16
        $region15: #{tpu_custom_call.1} parent=11 // pred_region
          %s141 = ssub.s32 128, 128
          %142 = vsyncadd [#allocation4], %s141
          %s143 = smul.addr %s23, 128
          %s144 = scalar_lea.hbm %s0, %s143
          %s146 = sshll.u32 [#allocation3], 4
          %s147 = int_to_ptr.vmem [resolvable:$true] %s146
          %149 = dma.hbm_to_vmem [thread:$0]  %s144, 128, %s147, [#allocation4]
        $region16: #{tpu_custom_call.1} parent=11 // pred_fallthru
          _
        // Predicated region
        $region17: #{tpu_custom_call.1} parent=11 // pred_check
          %p150 = pneg %p73
        $region18: #{tpu_custom_call.1} parent=11 // pred_check_branch
          %152 = sbr.rel (%p150) target = $region20
        $region19: #{tpu_custom_call.1} parent=11 // pred_region
          %s154 = ssub.s32 512, 512
          %155 = vsyncadd [#allocation7], %s154
          %s156 = sshll.u32 [#allocation6], 4
          %s157 = int_to_ptr.vmem [resolvable:$true] %s156
          %162 = dma.hbm_to_vmem [thread:$0]  %s1, 512, %s157, [#allocation7], 128, 128, 8
        $region20: #{tpu_custom_call.1} parent=11 // pred_fallthru
          _
        // Predicated region
        $region21: #{tpu_custom_call.1} parent=11 // pred_check
          %p163 = pneg %p94
        $region22: #{tpu_custom_call.1} parent=11 // pred_check_branch
          %165 = sbr.rel (%p163) target = $region24
        $region23: #{tpu_custom_call.1} parent=11 // pred_region
          _
        $region24: #{tpu_custom_call.1} parent=11 // pred_fallthru
          _
      $region12: #{tpu_custom_call.1} parent=5 // pred_fallthru
        _
      %p166 = scmp.lt.s32.totalorder %s14, 2
      // Predicated region
      $region25: #{tpu_custom_call.1} parent=5 // pred_check
        %p167 = pneg %p166
      $region26: #{tpu_custom_call.1} parent=5 // pred_check_branch
        %169 = sbr.rel (%p167) target = $region28
      $region27: #{tpu_custom_call.1} parent=5 // pred_region
        _
      $region28: #{tpu_custom_call.1} parent=5 // pred_fallthru
        _
      %p170 = scmp.le.s32.totalorder 1, %s14
      %p171 = scmp.lt.s32.totalorder %s14, 3
      %p172 = pnand %p170, %p171
      %p173 = pneg %p172
      // Predicated region
      $region29: #{tpu_custom_call.1} parent=5 // pred_check
        _
      $region30: #{tpu_custom_call.1} parent=5 // pred_check_branch
        %175 = sbr.rel (%p172) target = $region32
      $region31: #{tpu_custom_call.1} parent=5 // pred_region
        %s176 = ssub.s32 %s14, 1
        // Predicated region
        $region33: #{tpu_custom_call.1} parent=31 // pred_check
          %p177 = pneg %p52
        $region34: #{tpu_custom_call.1} parent=31 // pred_check_branch
          %179 = sbr.rel (%p177) target = $region36
        $region35: #{tpu_custom_call.1} parent=31 // pred_region
          %180 = dma.done [#allocation4], 128
        $region36: #{tpu_custom_call.1} parent=31 // pred_fallthru
          _
        // Predicated region
        $region37: #{tpu_custom_call.1} parent=31 // pred_check
          %p181 = pneg %p73
        $region38: #{tpu_custom_call.1} parent=31 // pred_check_branch
          %183 = sbr.rel (%p181) target = $region40
        $region39: #{tpu_custom_call.1} parent=31 // pred_region
          %184 = dma.done [#allocation7], 512
        $region40: #{tpu_custom_call.1} parent=31 // pred_fallthru
          _
        %p185 = pneg %p52
        %p186 = pneg %p49
        %p187 = pneg %p73
        %p188 = pneg %p70
        %p189 = pneg %p94
        %p190 = pneg %p91
        %p191 = pneg %p122
        %p192 = pneg %p119
        %s193 = sand.u32 %s109, 1
        %s194 = scalar_lea.sflag [#allocation5], %s193
        %s195 = sand.u32 %s109, 1
        %s196 = smul.addr %s195, 8
        %s197 = scalar_lea.vmem [#allocation8], %s196
        %p198 = scmp.eq.s32.totalorder %s24, 0
        // Predicated region
        $region41: #{tpu_custom_call.1} parent=31 // pred_check
          %p199 = pneg %p198
        $region42: #{tpu_custom_call.1} parent=31 // pred_check_branch
          %201 = sbr.rel (%p199) target = $region44
        $region43: #{tpu_custom_call.1} parent=31 // pred_region
          %v202 = vld [vmem:[#allocation3] sm:$0xff]
          %v203 = vld [vmem:[#allocation6] sm:$0xff]
          %v204 = vld [vmem:[#allocation6 + $0x8] sm:$0xff]
          %v205 = vld [vmem:[#allocation6 + $0x10] sm:$0xff]
          %v206 = vld [vmem:[#allocation6 + $0x18] sm:$0xff]
          %v207 = vld [vmem:[%s2] sm:$0x1]
          %v209 = vlaneseq
          %v210 = vshrl.u32 %v209, 7
          %v211 = vsub.s32 0, %v210
          %v212 = vrot.slane %v207, %v211
          %vm214 = vcmask 261120
          %v216 = vsel %vm214, %v202, 0
          %218 = vmatprep.subr.mxu0 0.0
          %219 = vmatpush1.msra.mxu0 0.0
          %220 = vmatprep.subr.mxu0 0.0
          %221 = vmatpush1.msra.mxu0 0.0
          %222 = vmatprep.subr.mxu0 0.0
          %223 = vmatpush1.msra.mxu0 0.0
          %224 = vmatprep.subr.mxu0 0.0
          %225 = vmatpush1.msra.mxu0 0.0
          %226 = vmatprep.subr.mxu0 0.0
          %227 = vmatpush1.msra.mxu0 0.0
          %228 = vmatprep.subr.mxu0 0.0
          %229 = vmatpush1.msra.mxu0 0.0
          %230 = vmatprep.subr.mxu0 0.0
          %231 = vmatpush1.msra.mxu0 0.0
          %232 = vmatprep.subr.mxu0 0.0
          %233 = vmatpush1.msra.mxu0 0.0
          %234 = vmatprep.subr.mxu0 0.0
          %235 = vmatpush1.msra.mxu0 0.0
          %236 = vmatprep.subr.mxu0 0.0
          %237 = vmatpush1.msra.mxu0 0.0
          %238 = vmatprep.subr.mxu0 0.0
          %239 = vmatpush1.msra.mxu0 0.0
          %240 = vmatprep.subr.mxu0 0.0
          %241 = vmatpush1.msra.mxu0 0.0
          %242 = vmatprep.subr.mxu0 0.0
          %243 = vmatpush1.msra.mxu0 %v206
          %244 = vmatprep.subr.mxu0 0.0
          %245 = vmatpush1.msra.mxu0 %v205
          %246 = vmatprep.subr.mxu0 0.0
          %247 = vmatpush1.msra.mxu0 %v204
          %248 = vmatprep.subr.mxu0 0.0
          %249 = vmatpush1.msra.mxu0 %v203
          %250 = vmatprep.subr.mxu0 0.0
          %251 = vmatpush2.msra.mxu0 0.0
          %252 = vmatprep.subr.mxu0 0.0
          %253 = vmatpush2.msra.mxu0 0.0
          %254 = vmatprep.subr.mxu0 0.0
          %255 = vmatpush2.msra.mxu0 0.0
          %256 = vmatprep.subr.mxu0 0.0
          %257 = vmatpush2.msra.mxu0 0.0
          %258 = vmatprep.subr.mxu0 0.0
          %259 = vmatpush2.msra.mxu0 0.0
          %260 = vmatprep.subr.mxu0 0.0
          %261 = vmatpush2.msra.mxu0 0.0
          %262 = vmatprep.subr.mxu0 0.0
          %263 = vmatpush2.msra.mxu0 0.0
          %264 = vmatprep.subr.mxu0 0.0
          %265 = vmatpush2.msra.mxu0 0.0
          %266 = vmatprep.subr.mxu0 0.0
          %267 = vmatpush2.msra.mxu0 0.0
          %268 = vmatprep.subr.mxu0 0.0
          %269 = vmatpush2.msra.mxu0 0.0
          %270 = vmatprep.subr.mxu0 0.0
          %271 = vmatpush2.msra.mxu0 0.0
          %272 = vmatprep.subr.mxu0 0.0
          %273 = vmatpush2.msra.mxu0 0.0
          %274 = vmatprep.subr.mxu0 0.0
          %275 = vmatpush2.msra.mxu0 0.0
          %276 = vmatprep.subr.mxu0 0.0
          %277 = vmatpush2.msra.mxu0 0.0
          %278 = vmatprep.subr.mxu0 0.0
          %279 = vmatpush2.msra.mxu0 0.0
          %280 = vmatprep.subr.mxu0 0.0
          %281 = vmatpush2.msra.mxu0 0.0
          %282 = vmatprep.mubr.f32.mxu0 0.0
          %283 = vmatmul.mubr.f32.gmra.mxu0 %v216
          %v284 = vpop.f32.mrf.mxu0
          %v285 = vadd.f32 %v212, %v284
          %v286 = vpop.f32.mrf.mxu0
          %287 = vdwg.mxu0
          %vm288 = vcmask 523264
          %289 = vst.msk [vmem:[#allocation2] sm:$0xff] %vm288, %v285
        $region44: #{tpu_custom_call.1} parent=31 // pred_fallthru
          _
        %v290 = vld [vmem:[#allocation2] sm:$0xff]
        %vm291 = vcmask 523264
        %292 = vst.msk [vmem:[%s197] sm:$0xff] %vm291, %v290
        %s293 = sand.u32 %s109, 1
        %s294 = scalar_lea.sflag [#allocation5], %s293
        %s295 = sand.u32 %s109, 1
        %s296 = smul.addr %s295, 8
        %s297 = scalar_lea.vmem [#allocation8], %s296
        // Predicated region
        $region45: #{tpu_custom_call.1} parent=31 // pred_check
          %p298 = pneg %p119
        $region46: #{tpu_custom_call.1} parent=31 // pred_check_branch
          %300 = sbr.rel (%p298) target = $region48
        $region47: #{tpu_custom_call.1} parent=31 // pred_region
          %s302 = ssub.s32 128, 128
          %303 = vsyncadd %s294, %s302
          %s304 = sadd.s32 %s23, %s24
          %s305 = smul.addr %s304, 128
          %s306 = scalar_lea.hbm %s3, %s305
          %s308 = sshll.u32 %s297, 4
          %s309 = int_to_ptr.vmem [resolvable:$true] %s308
          %311 = dma.vmem_to_hbm [thread:$0]  %s309, 128, %s306, %s294
        $region48: #{tpu_custom_call.1} parent=31 // pred_fallthru
          _
      $region32: #{tpu_custom_call.1} parent=5 // pred_fallthru
        _
      %p312 = scmp.le.s32.totalorder 2, %s14
      // Predicated region
      $region49: #{tpu_custom_call.1} parent=5 // pred_check
        %p313 = pneg %p312
      $region50: #{tpu_custom_call.1} parent=5 // pred_check_branch
        %315 = sbr.rel (%p313) target = $region52
      $region51: #{tpu_custom_call.1} parent=5 // pred_region
        %s316 = ssub.s32 %s14, 2
        // Predicated region
        $region53: #{tpu_custom_call.1} parent=51 // pred_check
          %p317 = pneg %p125
        $region54: #{tpu_custom_call.1} parent=51 // pred_check_branch
          %319 = sbr.rel (%p317) target = $region56
        $region55: #{tpu_custom_call.1} parent=51 // pred_region
          %s320 = sand.u32 %s110, 1
          %s321 = scalar_lea.sflag [#allocation5], %s320
          %s322 = sand.u32 %s110, 1
          %s323 = smul.addr %s322, 8
          %s324 = scalar_lea.vmem [#allocation8], %s323
          %325 = dma.done %s321, 128
        $region56: #{tpu_custom_call.1} parent=51 // pred_fallthru
          _
      $region52: #{tpu_custom_call.1} parent=5 // pred_fallthru
        _
    $region6: #{tpu_custom_call.1} parent=1 // loop_footer
      %s18 = sadd.s32 1, %s14
    $region7: #{tpu_custom_call.1} parent=1 // loop_footer_branch
      %13 = sbr.rel target = $region3
    $region8: #{tpu_custom_call.1} parent=1 // loop_exit
      _
    %326 = vsyncpa [#allocation4], 1
    %s327 = scalar_lea.sflag [#allocation4], 1
    %328 = vsyncpa %s327, 1
    %329 = vsyncpa [#allocation7], 1
    %330 = vsyncpa [#allocation5], 1
    %s331 = scalar_lea.sflag [#allocation5], 1
    %332 = vsyncpa %s331, 1

</llo_original>
